<compile_context>
chip_gen: v6e
topology: v6e:2x2x1
jax: 0.10.0
libtpu: 0.0.40
codegen_flags: <defaults>
</compile_context>

<pallas_src>
import jax
import jax.numpy as jnp
from jax.experimental import pallas as pl
from jax.experimental.pallas import tpu as pltpu

PAD = 128  # lane-dense width for all hidden/output feature dims


def _round_up(n, m):
    return ((n + m - 1) // m) * m


def _leaky_relu(x, slope=0.01):
    return jnp.where(x > 0, x, slope * x)


def fc_kernel(x_ref, w0_ref, w1_ref, w2_ref, c_ref, o_ref):
    """Fused 3-layer MLP on one (TB, F) batch tile.

    c_ref is an (8, PAD) slab: rows = [b0, s0, t0, b1, s1, t1, b2, unused].
    Weights are stored transposed (in_features, out_features) and zero-padded to
    PAD lanes, so padded activation lanes stay exactly 0 through the hidden layers
    (bias/scale/shift padding = 0).
    """
    b0 = c_ref[0:1, :]
    s0 = c_ref[1:2, :]
    t0 = c_ref[2:3, :]
    b1 = c_ref[3:4, :]
    s1 = c_ref[4:5, :]
    t1 = c_ref[5:6, :]
    b2 = c_ref[6:7, :]

    h = x_ref[...]

    # layer 0: Linear -> LeakyReLU -> BatchNorm1d (eval) -> Dropout(0) = id
    h = jnp.dot(h, w0_ref[...], preferred_element_type=jnp.float32) + b0
    h = _leaky_relu(h)
    h = h * s0 + t0

    # layer 1: Linear -> LeakyReLU -> BatchNorm1d (eval) -> Dropout(p) = id (eval)
    h = jnp.dot(h, w1_ref[...], preferred_element_type=jnp.float32) + b1
    h = _leaky_relu(h)
    h = h * s1 + t1

    # layer 2 (output): Linear -> Sigmoid (denominator reciprocal on the EUP slot)
    z = jnp.dot(h, w2_ref[...], preferred_element_type=jnp.float32) + b2
    o_ref[...] = pl.reciprocal(1.0 + jnp.exp(-z), approx=True)


def fully_connected_forward(x, packed_params, out_dim, tb=512):
    """x: (B, F) float32. packed_params = (w0, w1, w2, consts) from init_params."""
    w0, w1, w2, consts = packed_params
    B, F = x.shape

    # Batch tile: multiple of 8, capped at `tb` rows.  512-row tiles keep
    # (streamed tile + resident weights) * 2 buffers well under 32 MiB, so the same
    # config is safe on v7x's smaller VMEM while staying large enough to amortize
    # the ~0.35 us per-grid-step overhead on v5e/v6e.
    tb = min(tb, _round_up(B, 8))
    b_pad = _round_up(B, tb)
    if b_pad != B:
        x = jnp.pad(x, ((0, b_pad - B), (0, 0)))

    grid = (b_pad // tb,)

    out_padded = pl.pallas_call(
        fc_kernel,
        out_shape=jax.ShapeDtypeStruct((b_pad, PAD), jnp.float32),
        grid=grid,
        in_specs=[
            pl.BlockSpec((tb, F), lambda i: (i, 0)),        # streamed batch tile
            pl.BlockSpec((F, PAD), lambda i: (0, 0)),        # resident weights
            pl.BlockSpec((PAD, PAD), lambda i: (0, 0)),
            pl.BlockSpec((PAD, PAD), lambda i: (0, 0)),
            pl.BlockSpec((8, PAD), lambda i: (0, 0)),        # packed bias/BN slab
        ],
        out_specs=pl.BlockSpec((tb, PAD), lambda i: (i, 0)),  # lane-dense output slab
        compiler_params=pltpu.CompilerParams(
            dimension_semantics=("parallel",),               # batch tiles across v7x's 2 TCs
            vmem_limit_bytes=32 * 1024 * 1024,
        ),
    )(x, w0, w1, w2, consts)

    # Strip batch padding and the padded output lanes (true out_dim columns only).
    return out_padded[:B, :out_dim]


def init_params(key, layers_size):
    """Params for the fixed 3-layer DeepCINET MLP ([F, H1, H2, 1]).

    Linear init matches nn.Linear defaults (U(-1/sqrt(fan_in), 1/sqrt(fan_in)));
    BatchNorm1d defaults (gamma=1, beta=0, running_mean=0, running_var=1, eps=1e-5)
    are folded into per-feature scale/shift.  Returns (packed, raw):
      packed = (w0 (F,PAD), w1 (PAD,PAD), w2 (PAD,PAD), consts (8,PAD))
      raw    = (ws, bs, scales, shifts) in true (unpadded) widths, for the reference.
    Weights are kept fp32 to match PyTorch numerics exactly (bf16 would double MXU
    throughput on v5e but is unnecessary at these tiny widths).
    """
    assert len(layers_size) == 4, "kernel is specialized to 3 layers"
    eps = 1e-5
    n_layers = len(layers_size) - 1
    ws, bs, scales, shifts = [], [], [], []
    for i in range(n_layers):
        fan_in, fan_out = layers_size[i], layers_size[i + 1]
        key, kw, kb = jax.random.split(key, 3)
        bound = 1.0 / (float(fan_in) ** 0.5)
        w = jax.random.uniform(kw, (fan_in, fan_out), jnp.float32, -bound, bound)
        b = jax.random.uniform(kb, (fan_out,), jnp.float32, -bound, bound)
        ws.append(w)
        bs.append(b)
        if i != n_layers - 1:
            gamma = jnp.ones((fan_out,), jnp.float32)
            beta = jnp.zeros((fan_out,), jnp.float32)
            running_mean = jnp.zeros((fan_out,), jnp.float32)
            running_var = jnp.ones((fan_out,), jnp.float32)
            scale = gamma / jnp.sqrt(running_var + eps)
            shift = beta - running_mean * scale
            scales.append(scale)
            shifts.append(shift)

    def pad_w(w, rows, cols):
        return jnp.pad(w, ((0, rows - w.shape[0]), (0, cols - w.shape[1])))

    F = layers_size[0]
    w0 = pad_w(ws[0], F, PAD)      # (64, 128)
    w1 = pad_w(ws[1], PAD, PAD)    # (128, 128)
    w2 = pad_w(ws[2], PAD, PAD)    # (128, 128)

    # Pack the 7 small per-feature vectors into one (8, PAD) slab.
    consts = jnp.zeros((8, PAD), jnp.float32)
    rows = [bs[0], scales[0], shifts[0], bs[1], scales[1], shifts[1], bs[2]]
    for r, v in enumerate(rows):
        consts = consts.at[r, : v.shape[0]].set(v)

    return (w0, w1, w2, consts), (ws, bs, scales, shifts)


def fc_reference(x, raw):
    """Pure-JAX reference (PyTorch eval semantics) in true widths."""
    ws, bs, scales, shifts = raw
    h = x
    n = len(ws)
    for i in range(n):
        h = h @ ws[i] + bs[i]
        if i != n - 1:
            h = jnp.where(h > 0, h, 0.01 * h)
            h = h * scales[i] + shifts[i]
        else:
            h = jax.nn.sigmoid(h)
    return h


if __name__ == "__main__":
    layers_size = [64, 32, 16, 1]   # DeepCINET-style MLP sizes
    batch = 8                       # toy size; real tuning uses B in the tens of thousands

    key = jax.random.PRNGKey(0)
    key, kx = jax.random.split(key)
    # forward does x.view(x.size(0), -1); feed already-flat features (B, 64)
    x = jax.random.normal(kx, (batch, layers_size[0]), jnp.float32)

    packed, raw = init_params(key, layers_size)

    out = fully_connected_forward(x, packed, out_dim=layers_size[-1])
    out = jax.block_until_ready(out)

    assert out.shape == (batch, layers_size[-1])
    assert bool(jnp.all(jnp.isfinite(out)))
    # approx EUP reciprocal may drift by ~1e-4; allow a tiny tolerance on the range
    assert bool(jnp.all((out >= -1e-5) & (out <= 1.0 + 1e-5)))

    ref = fc_reference(x, raw)
    assert bool(jnp.allclose(out, ref, atol=1e-2, rtol=1e-2))

    print("KERNEL_OK")
</pallas_src>

<mosaic_0001>
module attributes {stable_mosaic.version = 11 : i64} {
  func.func @fc_kernel(%arg0: i32, %arg1: memref<8x64xf32, #tpu.memory_space<vmem>>, %arg2: memref<64x128xf32, #tpu.memory_space<vmem>>, %arg3: memref<128x128xf32, #tpu.memory_space<vmem>>, %arg4: memref<128x128xf32, #tpu.memory_space<vmem>>, %arg5: memref<8x128xf32, #tpu.memory_space<vmem>>, %arg6: memref<8x128xf32, #tpu.memory_space<vmem>>) attributes {dimension_semantics = [#tpu.dimension_semantics<parallel>], iteration_bounds = array<i64: 1>, scalar_prefetch = 0 : i64, scratch_operands = 0 : i64, tpu.core_type = #tpu.core_type<tc>, window_params = [{transform_indices = @transform_0, window_bounds = array<i64: 8, 64>}, {pipeline_mode = #tpu.pipeline_mode<synchronous>, transform_indices = @transform_1, window_bounds = array<i64: 64, 128>}, {pipeline_mode = #tpu.pipeline_mode<synchronous>, transform_indices = @transform_2, window_bounds = array<i64: 128, 128>}, {pipeline_mode = #tpu.pipeline_mode<synchronous>, transform_indices = @transform_3, window_bounds = array<i64: 128, 128>}, {pipeline_mode = #tpu.pipeline_mode<synchronous>, transform_indices = @transform_4, window_bounds = array<i64: 8, 128>}, {transform_indices = @transform_5, window_bounds = array<i64: 8, 128>}]} {
    %c0 = arith.constant 0 : index
    %c0_0 = arith.constant 0 : index
    %0 = vector.load %arg5[%c0, %c0_0] : memref<8x128xf32, #tpu.memory_space<vmem>>, vector<1x128xf32>
    %c1 = arith.constant 1 : index
    %c0_1 = arith.constant 0 : index
    %1 = vector.load %arg5[%c1, %c0_1] : memref<8x128xf32, #tpu.memory_space<vmem>>, vector<1x128xf32>
    %c2 = arith.constant 2 : index
    %c0_2 = arith.constant 0 : index
    %2 = vector.load %arg5[%c2, %c0_2] : memref<8x128xf32, #tpu.memory_space<vmem>>, vector<1x128xf32>
    %c3 = arith.constant 3 : index
    %c0_3 = arith.constant 0 : index
    %3 = vector.load %arg5[%c3, %c0_3] : memref<8x128xf32, #tpu.memory_space<vmem>>, vector<1x128xf32>
    %c4 = arith.constant 4 : index
    %c0_4 = arith.constant 0 : index
    %4 = vector.load %arg5[%c4, %c0_4] : memref<8x128xf32, #tpu.memory_space<vmem>>, vector<1x128xf32>
    %c5 = arith.constant 5 : index
    %c0_5 = arith.constant 0 : index
    %5 = vector.load %arg5[%c5, %c0_5] : memref<8x128xf32, #tpu.memory_space<vmem>>, vector<1x128xf32>
    %c6 = arith.constant 6 : index
    %c0_6 = arith.constant 0 : index
    %6 = vector.load %arg5[%c6, %c0_6] : memref<8x128xf32, #tpu.memory_space<vmem>>, vector<1x128xf32>
    %c0_7 = arith.constant 0 : index
    %c0_8 = arith.constant 0 : index
    %7 = vector.load %arg1[%c0_7, %c0_8] : memref<8x64xf32, #tpu.memory_space<vmem>>, vector<8x64xf32>
    %c0_9 = arith.constant 0 : index
    %c0_10 = arith.constant 0 : index
    %8 = vector.load %arg2[%c0_9, %c0_10] : memref<64x128xf32, #tpu.memory_space<vmem>>, vector<64x128xf32>
    %cst = arith.constant dense<0.000000e+00> : vector<8x128xf32>
    %9 = tpu.matmul %7, %8, %cst {dimension_numbers = #tpu.dot_dimension_numbers<[1], [0], [0], [1], [0, 0, 1, 1], [], []>} : vector<8x64xf32>, vector<64x128xf32>, vector<8x128xf32> -> vector<8x128xf32>
    %10 = vector.broadcast %0 : vector<1x128xf32> to vector<8x128xf32>
    %11 = arith.addf %9, %10 : vector<8x128xf32>
    %cst_11 = arith.constant 0.000000e+00 : f32
    %12 = vector.broadcast %cst_11 : f32 to vector<8x128xf32>
    %13 = arith.cmpf ogt, %11, %12 : vector<8x128xf32>
    %cst_12 = arith.constant 0.00999999977 : f32
    %14 = vector.broadcast %cst_12 : f32 to vector<8x128xf32>
    %15 = arith.mulf %14, %11 : vector<8x128xf32>
    %16 = arith.select %13, %11, %15 : vector<8x128xi1>, vector<8x128xf32>
    %17 = vector.broadcast %1 : vector<1x128xf32> to vector<8x128xf32>
    %18 = arith.mulf %16, %17 : vector<8x128xf32>
    %19 = vector.broadcast %2 : vector<1x128xf32> to vector<8x128xf32>
    %20 = arith.addf %18, %19 : vector<8x128xf32>
    %c0_13 = arith.constant 0 : index
    %c0_14 = arith.constant 0 : index
    %21 = vector.load %arg3[%c0_13, %c0_14] : memref<128x128xf32, #tpu.memory_space<vmem>>, vector<128x128xf32>
    %cst_15 = arith.constant dense<0.000000e+00> : vector<8x128xf32>
    %22 = tpu.matmul %20, %21, %cst_15 {dimension_numbers = #tpu.dot_dimension_numbers<[1], [0], [0], [1], [0, 0, 1, 1], [], []>} : vector<8x128xf32>, vector<128x128xf32>, vector<8x128xf32> -> vector<8x128xf32>
    %23 = vector.broadcast %3 : vector<1x128xf32> to vector<8x128xf32>
    %24 = arith.addf %22, %23 : vector<8x128xf32>
    %cst_16 = arith.constant 0.000000e+00 : f32
    %25 = vector.broadcast %cst_16 : f32 to vector<8x128xf32>
    %26 = arith.cmpf ogt, %24, %25 : vector<8x128xf32>
    %cst_17 = arith.constant 0.00999999977 : f32
    %27 = vector.broadcast %cst_17 : f32 to vector<8x128xf32>
    %28 = arith.mulf %27, %24 : vector<8x128xf32>
    %29 = arith.select %26, %24, %28 : vector<8x128xi1>, vector<8x128xf32>
    %30 = vector.broadcast %4 : vector<1x128xf32> to vector<8x128xf32>
    %31 = arith.mulf %29, %30 : vector<8x128xf32>
    %32 = vector.broadcast %5 : vector<1x128xf32> to vector<8x128xf32>
    %33 = arith.addf %31, %32 : vector<8x128xf32>
    %c0_18 = arith.constant 0 : index
    %c0_19 = arith.constant 0 : index
    %34 = vector.load %arg4[%c0_18, %c0_19] : memref<128x128xf32, #tpu.memory_space<vmem>>, vector<128x128xf32>
    %cst_20 = arith.constant dense<0.000000e+00> : vector<8x128xf32>
    %35 = tpu.matmul %33, %34, %cst_20 {dimension_numbers = #tpu.dot_dimension_numbers<[1], [0], [0], [1], [0, 0, 1, 1], [], []>} : vector<8x128xf32>, vector<128x128xf32>, vector<8x128xf32> -> vector<8x128xf32>
    %36 = vector.broadcast %6 : vector<1x128xf32> to vector<8x128xf32>
    %37 = arith.addf %35, %36 : vector<8x128xf32>
    %cst_21 = arith.constant 0.000000e+00 : f32
    %38 = vector.broadcast %cst_21 : f32 to vector<8x128xf32>
    %39 = arith.subf %38, %37 : vector<8x128xf32>
    %40 = math.exp %39 : vector<8x128xf32>
    %cst_22 = arith.constant 1.000000e+00 : f32
    %41 = vector.broadcast %cst_22 : f32 to vector<8x128xf32>
    %42 = arith.addf %41, %40 : vector<8x128xf32>
    %43 = tpu.reciprocal %42 {approx = true} : vector<8x128xf32> -> vector<8x128xf32>
    %c0_23 = arith.constant 0 : index
    %c0_24 = arith.constant 0 : index
    %44 = vector.load %arg6[%c0_23, %c0_24] : memref<8x128xf32, #tpu.memory_space<vmem>>, vector<8x128xf32>
    tpu.vector_store %arg6[%c0_23, %c0_24], %43 {strides = array<i32>} : memref<8x128xf32, #tpu.memory_space<vmem>>, vector<8x128xf32>,
    return
  }
  func.func @transform_0(%arg0: i32) -> (i32, i32) {
    %c0_i32 = arith.constant 0 : i32
    %c0_i32_0 = arith.constant 0 : i32
    return %arg0, %c0_i32 : i32, i32
  }
  func.func @transform_1(%arg0: i32) -> (i32, i32) {
    %c0_i32 = arith.constant 0 : i32
    %c0_i32_0 = arith.constant 0 : i32
    %c0_i32_1 = arith.constant 0 : i32
    return %c0_i32, %c0_i32_0 : i32, i32
  }
  func.func @transform_2(%arg0: i32) -> (i32, i32) {
    %c0_i32 = arith.constant 0 : i32
    %c0_i32_0 = arith.constant 0 : i32
    %c0_i32_1 = arith.constant 0 : i32
    return %c0_i32, %c0_i32_0 : i32, i32
  }
  func.func @transform_3(%arg0: i32) -> (i32, i32) {
    %c0_i32 = arith.constant 0 : i32
    %c0_i32_0 = arith.constant 0 : i32
    %c0_i32_1 = arith.constant 0 : i32
    return %c0_i32, %c0_i32_0 : i32, i32
  }
  func.func @transform_4(%arg0: i32) -> (i32, i32) {
    %c0_i32 = arith.constant 0 : i32
    %c0_i32_0 = arith.constant 0 : i32
    %c0_i32_1 = arith.constant 0 : i32
    return %c0_i32, %c0_i32_0 : i32, i32
  }
  func.func @transform_5(%arg0: i32) -> (i32, i32) {
    %c0_i32 = arith.constant 0 : i32
    %c0_i32_0 = arith.constant 0 : i32
    return %arg0, %c0_i32 : i32, i32
  }
}

</mosaic_0001>

<llo_original>
// kernel: tpu_custom_call.1
$region0: #{tpu_custom_call.1}
  #allocation0 [shape = 'u32[]', space=smem, size = 0x4, offset = 0x4, fixed_abs, tag = 'smem constant byte address 0x4 - core index']
  #allocation1 [shape = 'u32[144,128]{1,0:T(1,128)}', space=vmem, size = 0x12000, scoped, tag = 'internal scratch']
  %s0 = inlined_call_operand.hbm [shape: f32[8,64], index: 0, kind: input, shape index: {}]
  %s1 = inlined_call_operand.hbm [shape: f32[64,128], index: 1, kind: input, shape index: {}]
  %s2 = inlined_call_operand.hbm [shape: f32[128,128], index: 2, kind: input, shape index: {}]
  %s3 = inlined_call_operand.hbm [shape: f32[128,128], index: 3, kind: input, shape index: {}]
  %s4 = inlined_call_operand.hbm [shape: f32[8,128], index: 4, kind: input, shape index: {}]
  %s5 = inlined_call_operand.hbm [shape: f32[8,128], index: 5, kind: output, shape index: {}]
  %s6 = sld [smem:[#allocation0]]
  $region50: #{tpu_custom_call.1} parent=0
    _
  %s8 = ssub.s32 1, %s6
  %s9 = scalar_select 0, %s8, %s6
  $region1: #{tpu_custom_call.1} parent=0
    #allocation2 [shape = 'u8[4096]{0}', space=vmem, size = 0x1000, scoped, tag = 'input window, operand 0, single buffered']
    #allocation3 [shape = 's32[1]{0}', space=sflag, size = 0x4, scoped, tag = 'scoped memory for tpu_custom_call.1']
    #allocation4 [shape = 's32[1]{0}', space=sflag, size = 0x4, scoped, tag = 'scoped memory for tpu_custom_call.1']
    #allocation5 [shape = 'u8[32768]{0}', space=vmem, size = 0x8000, scoped, tag = 'input window, operand 1, single buffered']
    #allocation6 [shape = 's32[1]{0}', space=sflag, size = 0x4, scoped, tag = 'scoped memory for tpu_custom_call.1']
    #allocation7 [shape = 'u8[65536]{0}', space=vmem, size = 0x10000, scoped, tag = 'input window, operand 2, single buffered']
    #allocation8 [shape = 'u8[65536]{0}', space=vmem, size = 0x10000, scoped, tag = 'input window, operand 3, single buffered']
    #allocation9 [shape = 's32[1]{0}', space=sflag, size = 0x4, scoped, tag = 'scoped memory for tpu_custom_call.1']
    #allocation10 [shape = 'u8[4096]{0}', space=vmem, size = 0x1000, scoped, tag = 'input window, operand 4, single buffered']
    #allocation11 [shape = 'u8[4096]{0}', space=vmem, size = 0x1000, scoped, tag = 'output window, operand 0, single buffered']
    %10 = vsyncpa [#allocation3], 0
    %11 = vsyncpa [#allocation6], 0
    %12 = vsyncpa [#allocation9], 0
    %13 = vsyncpa [#allocation4], 0
    // Predicated region
    $region2: #{tpu_custom_call.1} parent=1 // pred_check
      _
    $region3: #{tpu_custom_call.1} parent=1 // pred_check_branch
      %15 = sbr.rel (0) target = $region5
    $region4: #{tpu_custom_call.1} parent=1 // pred_region
      %s17 = ssub.s32 128, 128
      %18 = vsyncadd [#allocation3], %s17
      %s20 = sshll.u32 [#allocation2], 4
      %s21 = int_to_ptr.vmem [resolvable:$true] %s20
      %23 = dma.hbm_to_vmem [thread:$0]  %s0, 128, %s21, [#allocation3]
    $region5: #{tpu_custom_call.1} parent=1 // pred_fallthru
      _
    // Predicated region
    $region6: #{tpu_custom_call.1} parent=1 // pred_check
      _
    $region7: #{tpu_custom_call.1} parent=1 // pred_check_branch
      %25 = sbr.rel (0) target = $region9
    $region8: #{tpu_custom_call.1} parent=1 // pred_region
      %s27 = ssub.s32 1024, 1024
      %28 = vsyncadd [#allocation6], %s27
      %s29 = sshll.u32 [#allocation5], 4
      %s30 = int_to_ptr.vmem [resolvable:$true] %s29
      %35 = dma.hbm_to_vmem [thread:$0]  %s1, 1024, %s30, [#allocation6], 128, 128, 8
    $region9: #{tpu_custom_call.1} parent=1 // pred_fallthru
      _
    // Predicated region
    $region10: #{tpu_custom_call.1} parent=1 // pred_check
      _
    $region11: #{tpu_custom_call.1} parent=1 // pred_check_branch
      %37 = sbr.rel (0) target = $region13
    $region12: #{tpu_custom_call.1} parent=1 // pred_region
      %s39 = ssub.s32 2048, 2048
      %40 = vsyncadd [#allocation6], %s39
      %s41 = sshll.u32 [#allocation7], 4
      %s42 = int_to_ptr.vmem [resolvable:$true] %s41
      %47 = dma.hbm_to_vmem [thread:$0]  %s2, 2048, %s42, [#allocation6], 128, 128, 8
    $region13: #{tpu_custom_call.1} parent=1 // pred_fallthru
      _
    // Predicated region
    $region14: #{tpu_custom_call.1} parent=1 // pred_check
      _
    $region15: #{tpu_custom_call.1} parent=1 // pred_check_branch
      %49 = sbr.rel (0) target = $region17
    $region16: #{tpu_custom_call.1} parent=1 // pred_region
      %s51 = ssub.s32 2048, 2048
      %52 = vsyncadd [#allocation9], %s51
      %s53 = sshll.u32 [#allocation8], 4
      %s54 = int_to_ptr.vmem [resolvable:$true] %s53
      %59 = dma.hbm_to_vmem [thread:$0]  %s3, 2048, %s54, [#allocation9], 128, 128, 8
    $region17: #{tpu_custom_call.1} parent=1 // pred_fallthru
      _
    // Predicated region
    $region18: #{tpu_custom_call.1} parent=1 // pred_check
      _
    $region19: #{tpu_custom_call.1} parent=1 // pred_check_branch
      %61 = sbr.rel (0) target = $region21
    $region20: #{tpu_custom_call.1} parent=1 // pred_region
      %s63 = ssub.s32 128, 128
      %64 = vsyncadd [#allocation9], %s63
      %s66 = sshll.u32 [#allocation10], 4
      %s67 = int_to_ptr.vmem [resolvable:$true] %s66
      %69 = dma.hbm_to_vmem [thread:$0]  %s4, 128, %s67, [#allocation9]
    $region21: #{tpu_custom_call.1} parent=1 // pred_fallthru
      _
    // Predicated region
    $region22: #{tpu_custom_call.1} parent=1 // pred_check
      _
    $region23: #{tpu_custom_call.1} parent=1 // pred_check_branch
      %71 = sbr.rel (0) target = $region25
    $region24: #{tpu_custom_call.1} parent=1 // pred_region
      %72 = dma.done [#allocation3], 128
    $region25: #{tpu_custom_call.1} parent=1 // pred_fallthru
      _
    // Predicated region
    $region26: #{tpu_custom_call.1} parent=1 // pred_check
      _
    $region27: #{tpu_custom_call.1} parent=1 // pred_check_branch
      %74 = sbr.rel (0) target = $region29
    $region28: #{tpu_custom_call.1} parent=1 // pred_region
      %75 = dma.done [#allocation6], 1024
    $region29: #{tpu_custom_call.1} parent=1 // pred_fallthru
      _
    // Predicated region
    $region30: #{tpu_custom_call.1} parent=1 // pred_check
      _
    $region31: #{tpu_custom_call.1} parent=1 // pred_check_branch
      %77 = sbr.rel (0) target = $region33
    $region32: #{tpu_custom_call.1} parent=1 // pred_region
      %78 = dma.done [#allocation6], 2048
    $region33: #{tpu_custom_call.1} parent=1 // pred_fallthru
      _
    // Predicated region
    $region34: #{tpu_custom_call.1} parent=1 // pred_check
      _
    $region35: #{tpu_custom_call.1} parent=1 // pred_check_branch
      %80 = sbr.rel (0) target = $region37
    $region36: #{tpu_custom_call.1} parent=1 // pred_region
      %81 = dma.done [#allocation9], 2048
    $region37: #{tpu_custom_call.1} parent=1 // pred_fallthru
      _
    // Predicated region
    $region38: #{tpu_custom_call.1} parent=1 // pred_check
      _
    $region39: #{tpu_custom_call.1} parent=1 // pred_check_branch
      %83 = sbr.rel (0) target = $region41
    $region40: #{tpu_custom_call.1} parent=1 // pred_region
      %84 = dma.done [#allocation9], 128
    $region41: #{tpu_custom_call.1} parent=1 // pred_fallthru
      _
    %v85 = vld [vmem:[#allocation10] sm:$0x1]
    %v86 = vld [vmem:[#allocation10 + $0x1] sm:$0x1]
    %v87 = vld [vmem:[#allocation10 + $0x2] sm:$0x1]
    %v88 = vld [vmem:[#allocation10 + $0x3] sm:$0x1]
    %v89 = vld [vmem:[#allocation10 + $0x4] sm:$0x1]
    %v90 = vld [vmem:[#allocation10 + $0x5] sm:$0x1]
    %v91 = vld [vmem:[#allocation10 + $0x6] sm:$0x1]
    %v92 = vld [vmem:[#allocation2] sm:$0xff]
    %v93 = vld [vmem:[#allocation5] sm:$0xff]
    %v94 = vld [vmem:[#allocation5 + $0x8] sm:$0xff]
    %v95 = vld [vmem:[#allocation5 + $0x10] sm:$0xff]
    %v96 = vld [vmem:[#allocation5 + $0x18] sm:$0xff]
    %v97 = vld [vmem:[#allocation5 + $0x20] sm:$0xff]
    %v98 = vld [vmem:[#allocation5 + $0x28] sm:$0xff]
    %v99 = vld [vmem:[#allocation5 + $0x30] sm:$0xff]
    %v100 = vld [vmem:[#allocation5 + $0x38] sm:$0xff]
    %v101 = vlaneseq
    %v102 = vshrl.u32 %v101, 7
    %v103 = vsub.s32 0, %v102
    %v104 = vrot.slane %v85, %v103
    %vm105 = vcmask 523264
    %v107 = vsel %vm105, %v92, 0
    %109 = vmatprep.subr.mxu0 0.0
    %110 = vmatpush1.msra.mxu0 0.0
    %111 = vmatprep.subr.mxu0 0.0
    %112 = vmatpush1.msra.mxu0 0.0
    %113 = vmatprep.subr.mxu0 0.0
    %114 = vmatpush1.msra.mxu0 0.0
    %115 = vmatprep.subr.mxu0 0.0
    %116 = vmatpush1.msra.mxu0 0.0
    %117 = vmatprep.subr.mxu0 0.0
    %118 = vmatpush1.msra.mxu0 0.0
    %119 = vmatprep.subr.mxu0 0.0
    %120 = vmatpush1.msra.mxu0 0.0
    %121 = vmatprep.subr.mxu0 0.0
    %122 = vmatpush1.msra.mxu0 0.0
    %123 = vmatprep.subr.mxu0 0.0
    %124 = vmatpush1.msra.mxu0 0.0
    %125 = vmatprep.subr.mxu0 0.0
    %126 = vmatpush1.msra.mxu0 %v100
    %127 = vmatprep.subr.mxu0 0.0
    %128 = vmatpush1.msra.mxu0 %v99
    %129 = vmatprep.subr.mxu0 0.0
    %130 = vmatpush1.msra.mxu0 %v98
    %131 = vmatprep.subr.mxu0 0.0
    %132 = vmatpush1.msra.mxu0 %v97
    %133 = vmatprep.subr.mxu0 0.0
    %134 = vmatpush1.msra.mxu0 %v96
    %135 = vmatprep.subr.mxu0 0.0
    %136 = vmatpush1.msra.mxu0 %v95
    %137 = vmatprep.subr.mxu0 0.0
    %138 = vmatpush1.msra.mxu0 %v94
    %139 = vmatprep.subr.mxu0 0.0
    %140 = vmatpush1.msra.mxu0 %v93
    %141 = vmatprep.subr.mxu0 0.0
    %142 = vmatpush2.msra.mxu0 0.0
    %143 = vmatprep.subr.mxu0 0.0
    %144 = vmatpush2.msra.mxu0 0.0
    %145 = vmatprep.subr.mxu0 0.0
    %146 = vmatpush2.msra.mxu0 0.0
    %147 = vmatprep.subr.mxu0 0.0
    %148 = vmatpush2.msra.mxu0 0.0
    %149 = vmatprep.subr.mxu0 0.0
    %150 = vmatpush2.msra.mxu0 0.0
    %151 = vmatprep.subr.mxu0 0.0
    %152 = vmatpush2.msra.mxu0 0.0
    %153 = vmatprep.subr.mxu0 0.0
    %154 = vmatpush2.msra.mxu0 0.0
    %155 = vmatprep.subr.mxu0 0.0
    %156 = vmatpush2.msra.mxu0 0.0
    %157 = vmatprep.subr.mxu0 0.0
    %158 = vmatpush2.msra.mxu0 0.0
    %159 = vmatprep.subr.mxu0 0.0
    %160 = vmatpush2.msra.mxu0 0.0
    %161 = vmatprep.subr.mxu0 0.0
    %162 = vmatpush2.msra.mxu0 0.0
    %163 = vmatprep.subr.mxu0 0.0
    %164 = vmatpush2.msra.mxu0 0.0
    %165 = vmatprep.subr.mxu0 0.0
    %166 = vmatpush2.msra.mxu0 0.0
    %167 = vmatprep.subr.mxu0 0.0
    %168 = vmatpush2.msra.mxu0 0.0
    %169 = vmatprep.subr.mxu0 0.0
    %170 = vmatpush2.msra.mxu0 0.0
    %171 = vmatprep.subr.mxu0 0.0
    %172 = vmatpush2.msra.mxu0 0.0
    %173 = vmatprep.mubr.f32.mxu0 0.0
    %174 = vmatmul.mubr.f32.gmra.mxu0 %v107
    %v175 = vpop.f32.mrf.mxu0
    %v176 = vadd.f32 %v104, %v175
    %v177 = vpop.f32.mrf.mxu0
    %178 = vdwg.mxu0
    %vm179 = vcmp.gt.f32.partialorder %v176, 0.0
    %v180 = vmul.f32 %v176, 0.01
    %v181 = vsel %vm179, %v176, %v180
    %v182 = vlaneseq
    %v183 = vshrl.u32 %v182, 7
    %v184 = vsub.s32 0, %v183
    %v185 = vrot.slane %v86, %v184
    %v186 = vmul.f32 %v181, %v185
    %v187 = vlaneseq
    %v188 = vshrl.u32 %v187, 7
    %v189 = vsub.s32 0, %v188
    %v190 = vrot.slane %v87, %v189
    %v191 = vadd.f32 %v186, %v190
    %v192 = vld [vmem:[#allocation7] sm:$0xff]
    %v193 = vld [vmem:[#allocation7 + $0x8] sm:$0xff]
    %v194 = vld [vmem:[#allocation7 + $0x10] sm:$0xff]
    %v195 = vld [vmem:[#allocation7 + $0x18] sm:$0xff]
    %v196 = vld [vmem:[#allocation7 + $0x20] sm:$0xff]
    %v197 = vld [vmem:[#allocation7 + $0x28] sm:$0xff]
    %v198 = vld [vmem:[#allocation7 + $0x30] sm:$0xff]
    %v199 = vld [vmem:[#allocation7 + $0x38] sm:$0xff]
    %v200 = vld [vmem:[#allocation7 + $0x40] sm:$0xff]
    %v201 = vld [vmem:[#allocation7 + $0x48] sm:$0xff]
    %v202 = vld [vmem:[#allocation7 + $0x50] sm:$0xff]
    %v203 = vld [vmem:[#allocation7 + $0x58] sm:$0xff]
    %v204 = vld [vmem:[#allocation7 + $0x60] sm:$0xff]
    %v205 = vld [vmem:[#allocation7 + $0x68] sm:$0xff]
    %v206 = vld [vmem:[#allocation7 + $0x70] sm:$0xff]
    %v207 = vld [vmem:[#allocation7 + $0x78] sm:$0xff]
    %v208 = vlaneseq
    %v209 = vshrl.u32 %v208, 7
    %v210 = vsub.s32 0, %v209
    %v211 = vrot.slane %v88, %v210
    %212 = vmatprep.subr.mxu0 0.0
    %213 = vmatpush1.msra.mxu0 %v207
    %214 = vmatprep.subr.mxu0 0.0
    %215 = vmatpush1.msra.mxu0 %v206
    %216 = vmatprep.subr.mxu0 0.0
    %217 = vmatpush1.msra.mxu0 %v205
    %218 = vmatprep.subr.mxu0 0.0
    %219 = vmatpush1.msra.mxu0 %v204
    %220 = vmatprep.subr.mxu0 0.0
    %221 = vmatpush1.msra.mxu0 %v203
    %222 = vmatprep.subr.mxu0 0.0
    %223 = vmatpush1.msra.mxu0 %v202
    %224 = vmatprep.subr.mxu0 0.0
    %225 = vmatpush1.msra.mxu0 %v201
    %226 = vmatprep.subr.mxu0 0.0
    %227 = vmatpush1.msra.mxu0 %v200
    %228 = vmatprep.subr.mxu0 0.0
    %229 = vmatpush1.msra.mxu0 %v199
    %230 = vmatprep.subr.mxu0 0.0
    %231 = vmatpush1.msra.mxu0 %v198
    %232 = vmatprep.subr.mxu0 0.0
    %233 = vmatpush1.msra.mxu0 %v197
    %234 = vmatprep.subr.mxu0 0.0
    %235 = vmatpush1.msra.mxu0 %v196
    %236 = vmatprep.subr.mxu0 0.0
    %237 = vmatpush1.msra.mxu0 %v195
    %238 = vmatprep.subr.mxu0 0.0
    %239 = vmatpush1.msra.mxu0 %v194
    %240 = vmatprep.subr.mxu0 0.0
    %241 = vmatpush1.msra.mxu0 %v193
    %242 = vmatprep.subr.mxu0 0.0
    %243 = vmatpush1.msra.mxu0 %v192
    %244 = vmatprep.subr.mxu0 0.0
    %245 = vmatpush2.msra.mxu0 0.0
    %246 = vmatprep.subr.mxu0 0.0
    %247 = vmatpush2.msra.mxu0 0.0
    %248 = vmatprep.subr.mxu0 0.0
    %249 = vmatpush2.msra.mxu0 0.0
    %250 = vmatprep.subr.mxu0 0.0
    %251 = vmatpush2.msra.mxu0 0.0
    %252 = vmatprep.subr.mxu0 0.0
    %253 = vmatpush2.msra.mxu0 0.0
    %254 = vmatprep.subr.mxu0 0.0
    %255 = vmatpush2.msra.mxu0 0.0
    %256 = vmatprep.subr.mxu0 0.0
    %257 = vmatpush2.msra.mxu0 0.0
    %258 = vmatprep.subr.mxu0 0.0
    %259 = vmatpush2.msra.mxu0 0.0
    %260 = vmatprep.subr.mxu0 0.0
    %261 = vmatpush2.msra.mxu0 0.0
    %262 = vmatprep.subr.mxu0 0.0
    %263 = vmatpush2.msra.mxu0 0.0
    %264 = vmatprep.subr.mxu0 0.0
    %265 = vmatpush2.msra.mxu0 0.0
    %266 = vmatprep.subr.mxu0 0.0
    %267 = vmatpush2.msra.mxu0 0.0
    %268 = vmatprep.subr.mxu0 0.0
    %269 = vmatpush2.msra.mxu0 0.0
    %270 = vmatprep.subr.mxu0 0.0
    %271 = vmatpush2.msra.mxu0 0.0
    %272 = vmatprep.subr.mxu0 0.0
    %273 = vmatpush2.msra.mxu0 0.0
    %274 = vmatprep.subr.mxu0 0.0
    %275 = vmatpush2.msra.mxu0 0.0
    %276 = vmatprep.mubr.f32.mxu0 0.0
    %277 = vmatmul.mubr.f32.gmra.mxu0 %v191
    %v278 = vpop.f32.mrf.mxu0
    %v279 = vadd.f32 %v211, %v278
    %v280 = vpop.f32.mrf.mxu0
    %281 = vdwg.mxu0
    %vm282 = vcmp.gt.f32.partialorder %v279, 0.0
    %v283 = vmul.f32 %v279, 0.01
    %v284 = vsel %vm282, %v279, %v283
    %v285 = vlaneseq
    %v286 = vshrl.u32 %v285, 7
    %v287 = vsub.s32 0, %v286
    %v288 = vrot.slane %v89, %v287
    %v289 = vmul.f32 %v284, %v288
    %v290 = vlaneseq
    %v291 = vshrl.u32 %v290, 7
    %v292 = vsub.s32 0, %v291
    %v293 = vrot.slane %v90, %v292
    %v294 = vadd.f32 %v289, %v293
    %v295 = vld [vmem:[#allocation8] sm:$0xff]
    %v296 = vld [vmem:[#allocation8 + $0x8] sm:$0xff]
    %v297 = vld [vmem:[#allocation8 + $0x10] sm:$0xff]
    %v298 = vld [vmem:[#allocation8 + $0x18] sm:$0xff]
    %v299 = vld [vmem:[#allocation8 + $0x20] sm:$0xff]
    %v300 = vld [vmem:[#allocation8 + $0x28] sm:$0xff]
    %v301 = vld [vmem:[#allocation8 + $0x30] sm:$0xff]
    %v302 = vld [vmem:[#allocation8 + $0x38] sm:$0xff]
    %v303 = vld [vmem:[#allocation8 + $0x40] sm:$0xff]
    %v304 = vld [vmem:[#allocation8 + $0x48] sm:$0xff]
    %v305 = vld [vmem:[#allocation8 + $0x50] sm:$0xff]
    %v306 = vld [vmem:[#allocation8 + $0x58] sm:$0xff]
    %v307 = vld [vmem:[#allocation8 + $0x60] sm:$0xff]
    %v308 = vld [vmem:[#allocation8 + $0x68] sm:$0xff]
    %v309 = vld [vmem:[#allocation8 + $0x70] sm:$0xff]
    %v310 = vld [vmem:[#allocation8 + $0x78] sm:$0xff]
    %v311 = vlaneseq
    %v312 = vshrl.u32 %v311, 7
    %v313 = vsub.s32 0, %v312
    %v314 = vrot.slane %v91, %v313
    %315 = vmatprep.subr.mxu0 0.0
    %316 = vmatpush1.msra.mxu0 %v310
    %317 = vmatprep.subr.mxu0 0.0
    %318 = vmatpush1.msra.mxu0 %v309
    %319 = vmatprep.subr.mxu0 0.0
    %320 = vmatpush1.msra.mxu0 %v308
    %321 = vmatprep.subr.mxu0 0.0
    %322 = vmatpush1.msra.mxu0 %v307
    %323 = vmatprep.subr.mxu0 0.0
    %324 = vmatpush1.msra.mxu0 %v306
    %325 = vmatprep.subr.mxu0 0.0
    %326 = vmatpush1.msra.mxu0 %v305
    %327 = vmatprep.subr.mxu0 0.0
    %328 = vmatpush1.msra.mxu0 %v304
    %329 = vmatprep.subr.mxu0 0.0
    %330 = vmatpush1.msra.mxu0 %v303
    %331 = vmatprep.subr.mxu0 0.0
    %332 = vmatpush1.msra.mxu0 %v302
    %333 = vmatprep.subr.mxu0 0.0
    %334 = vmatpush1.msra.mxu0 %v301
    %335 = vmatprep.subr.mxu0 0.0
    %336 = vmatpush1.msra.mxu0 %v300
    %337 = vmatprep.subr.mxu0 0.0
    %338 = vmatpush1.msra.mxu0 %v299
    %339 = vmatprep.subr.mxu0 0.0
    %340 = vmatpush1.msra.mxu0 %v298
    %341 = vmatprep.subr.mxu0 0.0
    %342 = vmatpush1.msra.mxu0 %v297
    %343 = vmatprep.subr.mxu0 0.0
    %344 = vmatpush1.msra.mxu0 %v296
    %345 = vmatprep.subr.mxu0 0.0
    %346 = vmatpush1.msra.mxu0 %v295
    %347 = vmatprep.subr.mxu0 0.0
    %348 = vmatpush2.msra.mxu0 0.0
    %349 = vmatprep.subr.mxu0 0.0
    %350 = vmatpush2.msra.mxu0 0.0
    %351 = vmatprep.subr.mxu0 0.0
    %352 = vmatpush2.msra.mxu0 0.0
    %353 = vmatprep.subr.mxu0 0.0
    %354 = vmatpush2.msra.mxu0 0.0
    %355 = vmatprep.subr.mxu0 0.0
    %356 = vmatpush2.msra.mxu0 0.0
    %357 = vmatprep.subr.mxu0 0.0
    %358 = vmatpush2.msra.mxu0 0.0
    %359 = vmatprep.subr.mxu0 0.0
    %360 = vmatpush2.msra.mxu0 0.0
    %361 = vmatprep.subr.mxu0 0.0
    %362 = vmatpush2.msra.mxu0 0.0
    %363 = vmatprep.subr.mxu0 0.0
    %364 = vmatpush2.msra.mxu0 0.0
    %365 = vmatprep.subr.mxu0 0.0
    %366 = vmatpush2.msra.mxu0 0.0
    %367 = vmatprep.subr.mxu0 0.0
    %368 = vmatpush2.msra.mxu0 0.0
    %369 = vmatprep.subr.mxu0 0.0
    %370 = vmatpush2.msra.mxu0 0.0
    %371 = vmatprep.subr.mxu0 0.0
    %372 = vmatpush2.msra.mxu0 0.0
    %373 = vmatprep.subr.mxu0 0.0
    %374 = vmatpush2.msra.mxu0 0.0
    %375 = vmatprep.subr.mxu0 0.0
    %376 = vmatpush2.msra.mxu0 0.0
    %377 = vmatprep.subr.mxu0 0.0
    %378 = vmatpush2.msra.mxu0 0.0
    %379 = vmatprep.mubr.f32.mxu0 0.0
    %380 = vmatmul.mubr.f32.gmra.mxu0 %v294
    %v381 = vpop.f32.mrf.mxu0
    %v382 = vadd.f32 %v314, %v381
    %v383 = vpop.f32.mrf.mxu0
    %384 = vdwg.mxu0
    %v385 = vsub.f32 0.0, %v382
    %v386 = vmul.f32 %v385, 1.442695
    %v387 = vpow.pop %v386
    %v388 = vadd.f32 %v387, 1.0
    %v389 = vrcp.pop %v388
    %390 = vst [vmem:[#allocation11] sm:$0xff] %v389
    // Predicated region
    $region42: #{tpu_custom_call.1} parent=1 // pred_check
      _
    $region43: #{tpu_custom_call.1} parent=1 // pred_check_branch
      %392 = sbr.rel (0) target = $region45
    $region44: #{tpu_custom_call.1} parent=1 // pred_region
      %s394 = ssub.s32 128, 128
      %395 = vsyncadd [#allocation4], %s394
      %s397 = sshll.u32 [#allocation11], 4
      %s398 = int_to_ptr.vmem [resolvable:$true] %s397
      %400 = dma.vmem_to_hbm [thread:$0]  %s398, 128, %s5, [#allocation4]
    $region45: #{tpu_custom_call.1} parent=1 // pred_fallthru
      _
    // Predicated region
    $region46: #{tpu_custom_call.1} parent=1 // pred_check
      _
    $region47: #{tpu_custom_call.1} parent=1 // pred_check_branch
      %402 = sbr.rel (0) target = $region49
    $region48: #{tpu_custom_call.1} parent=1 // pred_region
      %403 = dma.done [#allocation4], 128
    $region49: #{tpu_custom_call.1} parent=1 // pred_fallthru
      _
    %404 = vsyncpa [#allocation3], 1
    %405 = vsyncpa [#allocation6], 1
    %406 = vsyncpa [#allocation9], 1
    %407 = vsyncpa [#allocation4], 1

</llo_original>
